<compile_context>
chip_gen: v7x
topology: tpu7x:2x2x1
jax: 0.10.0
libtpu: 0.0.40
codegen_flags: <defaults>
</compile_context>

<pallas_src>
import functools
import math

import jax
import jax.numpy as jnp
import numpy as np
from jax.experimental import pallas as pl
from jax.experimental.pallas import tpu as pltpu

_DEG2RAD = math.pi / 180.0
_HALF_PI = math.pi / 2.0


# ---------------------------------------------------------------------------
# Kernel helpers
# ---------------------------------------------------------------------------
def _smooth(d_abs, *, beta, logspace):
    """fvcore-style smooth-L1 on log1p(|d|), optionally log1p'd again (logspace)."""
    n = jnp.log1p(d_abs)
    if beta < 1e-5:
        loss = n
    else:
        # constant multiply instead of a per-element divide (perf review #3)
        loss = jnp.where(n < beta, (0.5 / beta) * n * n, n - 0.5 * beta)
    if logspace:
        loss = jnp.log1p(loss)
    return loss


def _reduce_kernel(inp_ref, tgt_ref, w_ref, out_ref, *, beta, logspace, inner_mean):
    """reduction in {'sum','mean'}: one dense (8,128) partial sum per tile."""
    f32 = jnp.float32
    sm = functools.partial(_smooth, beta=beta, logspace=logspace)
    plane = lambda ref, f: ref[f].astype(f32)          # (8, TC) feature plane

    # features 0,1 (x, y): identical in both branches -> compute once, reuse
    s_xy = sm(jnp.abs(plane(inp_ref, 0) - plane(tgt_ref, 0))) \
         + sm(jnp.abs(plane(inp_ref, 1) - plane(tgt_ref, 1)))

    xw, xh = plane(inp_ref, 2), plane(inp_ref, 3)
    tw, th = plane(tgt_ref, 2), plane(tgt_ref, 3)
    xa = plane(inp_ref, 4) * _DEG2RAD                  # degrees -> radians
    ta = plane(tgt_ref, 4) * _DEG2RAD
    da = jnp.abs(xa - ta)

    s0 = s_xy + sm(jnp.abs(xw - tw)) + sm(jnp.abs(xh - th)) + sm(da)
    s1 = s_xy + sm(jnp.abs(xh - tw)) + sm(jnp.abs(xw - th)) \
              + sm(jnp.abs(_HALF_PI - da))
    if inner_mean:                                     # reduction == 'mean' inner mean
        s0 = s0 * 0.2
        s1 = s1 * 0.2

    per_box = jnp.minimum(s0, s1) * w_ref[...].astype(f32)   # (8, TC)

    # Lane-chunk add tree (pure VPU, no XLU reduce): (8, TC) -> one (8,128) vreg.
    tc = per_box.shape[-1]
    chunks = [per_box[:, k * 128:(k + 1) * 128] for k in range(tc // 128)]
    while len(chunks) > 1:
        nxt = [a + b for a, b in zip(chunks[0::2], chunks[1::2])]
        if len(chunks) % 2:
            nxt.append(chunks[-1])
        chunks = nxt
    out_ref[...] = chunks[0]


def _none_kernel(inp_ref, tgt_ref, w_ref, out_ref, *, beta, logspace):
    """reduction == 'none': per-(box, feature) min over the two branches."""
    f32 = jnp.float32
    sm = functools.partial(_smooth, beta=beta, logspace=logspace)
    plane = lambda ref, f: ref[f].astype(f32)
    w = w_ref[...].astype(f32)                         # broadcast over features
    odt = out_ref.dtype

    # features 0,1: both branches identical -> the min is just the branch-0 loss
    out_ref[0] = (sm(jnp.abs(plane(inp_ref, 0) - plane(tgt_ref, 0))) * w).astype(odt)
    out_ref[1] = (sm(jnp.abs(plane(inp_ref, 1) - plane(tgt_ref, 1))) * w).astype(odt)

    xw, xh = plane(inp_ref, 2), plane(inp_ref, 3)
    tw, th = plane(tgt_ref, 2), plane(tgt_ref, 3)
    xa = plane(inp_ref, 4) * _DEG2RAD
    ta = plane(tgt_ref, 4) * _DEG2RAD
    da = jnp.abs(xa - ta)

    out_ref[2] = (jnp.minimum(sm(jnp.abs(xw - tw)), sm(jnp.abs(xh - tw))) * w).astype(odt)
    out_ref[3] = (jnp.minimum(sm(jnp.abs(xh - th)), sm(jnp.abs(xw - th))) * w).astype(odt)
    out_ref[4] = (jnp.minimum(sm(da), sm(jnp.abs(_HALF_PI - da))) * w).astype(odt)


# ---------------------------------------------------------------------------
# Wrapper
# ---------------------------------------------------------------------------
def _cdiv(a, b):
    return -(-a // b)


def _round_up(x, m):
    return _cdiv(x, m) * m


def _tile_plan(n_boxes, max_tile_c=4096, min_split_c=256):
    """Pick (tile_c, grid, c_pad): columns (8 boxes each) per tile, # tiles, padded cols."""
    c_needed = _cdiv(max(n_boxes, 1), 8)
    c128 = _round_up(c_needed, 128)
    n_tiles = _cdiv(c128, max_tile_c)
    if c128 >= 2 * min_split_c:
        n_tiles = max(n_tiles, 2)          # keep both v7x TensorCores busy
    tile_c = _round_up(_cdiv(c128, n_tiles), 128)
    c_pad = n_tiles * tile_c               # exact grid coverage: no ragged blocks
    return tile_c, n_tiles, c_pad


def modulated_smooth_l1_loss(inputs, targets, weight=None, *,
                             beta=1.0 / 9, reduction='sum', logspace=True,
                             max_tile_c=4096, min_split_c=256):
    """JAX/Pallas port of ModulatedSmoothL1Loss.forward.

    inputs, targets: (N, 5) boxes (x, y, w, h, angle_deg); weight: optional (N,).
    """
    N, F = inputs.shape
    assert F == 5, "ModulatedSmoothL1Loss expects 5 box parameters per row"
    assert targets.shape == (N, 5)

    # weight is applied only when weight.sum() > 0 (matches the PyTorch guard)
    ones = jnp.ones((N,), jnp.float32)
    if weight is None:
        eff_w = ones
    else:
        w32 = weight.astype(jnp.float32)
        eff_w = jnp.where(jnp.sum(w32) > 0, w32, ones)

    tile_c, grid, c_pad = _tile_plan(N, max_tile_c, min_split_c)
    n_pad = 8 * c_pad

    # One fused relayout: (N,5) -> dense feature planes (5, 8, c_pad).
    # Zero padding => padded boxes have branch-0 loss exactly 0, so min(...) = 0
    # and they contribute nothing (no in-kernel masking needed).
    # TODO(synk): callers that already hold the packed (5, 8, C) layout could skip this.
    def pack(x):
        xp = jnp.pad(x, ((0, n_pad - N), (0, 0)))
        return xp.reshape(8, c_pad, 5).transpose(2, 0, 1)

    inp_p = pack(inputs)                                  # source dtype kept in HBM
    tgt_p = pack(targets)
    w_p = jnp.pad(eff_w, (0, n_pad - N)).reshape(8, c_pad)

    box_spec = pl.BlockSpec((5, 8, tile_c), lambda i: (0, 0, i))
    w_spec = pl.BlockSpec((8, tile_c), lambda i: (0, i))
    cparams = pltpu.CompilerParams(dimension_semantics=("parallel",))

    if reduction in ('sum', 'mean'):
        kernel = functools.partial(_reduce_kernel, beta=beta, logspace=logspace,
                                   inner_mean=(reduction == 'mean'))
        partials = pl.pallas_call(
            kernel,
            out_shape=jax.ShapeDtypeStruct((8, 128 * grid), jnp.float32),
            grid_spec=pltpu.PrefetchScalarGridSpec(
                num_scalar_prefetch=0,
                grid=(grid,),
                in_specs=[box_spec, box_spec, w_spec],
                out_specs=pl.BlockSpec((8, 128), lambda i: (0, i)),
            ),
            compiler_params=cparams,
        )(inp_p, tgt_p, w_p)
        total = jnp.sum(partials)
        return total if reduction == 'sum' else total / N

    # reduction == 'none'
    kernel = functools.partial(_none_kernel, beta=beta, logspace=logspace)
    out_p = pl.pallas_call(
        kernel,
        out_shape=jax.ShapeDtypeStruct((5, 8, c_pad), jnp.float32),
        grid_spec=pltpu.PrefetchScalarGridSpec(
            num_scalar_prefetch=0,
            grid=(grid,),
            in_specs=[box_spec, box_spec, w_spec],
            out_specs=pl.BlockSpec((5, 8, tile_c), lambda i: (0, 0, i)),
        ),
        compiler_params=cparams,
    )(inp_p, tgt_p, w_p)
    # TODO(synk): consumers able to accept the packed (5, 8, C) layout should skip
    #             this unpack relayout (it is an extra full read+write of the output).
    return out_p.transpose(1, 2, 0).reshape(n_pad, 5)[:N]


# ---------------------------------------------------------------------------
# Pure-JAX reference (mirrors the PyTorch forward, sans the loss_2 NameError)
# ---------------------------------------------------------------------------
def _reference(inputs, targets, weight=None, *, beta=1.0 / 9, reduction='sum',
               logspace=True):
    inputs = inputs.astype(jnp.float32).at[:, 4].mul(_DEG2RAD)
    targets = targets.astype(jnp.float32).at[:, 4].mul(_DEG2RAD)

    def smooth(l1_abs):
        n = jnp.log1p(l1_abs)
        if beta < 1e-5:
            return n
        return jnp.where(n < beta, 0.5 * n ** 2 / beta, n - 0.5 * beta)

    loss_0 = smooth(jnp.abs(inputs - targets))
    inp_tmp = inputs[:, jnp.array([0, 1, 3, 2, 4])]
    l1_abs1 = jnp.abs(inp_tmp - targets)
    l1_abs1 = l1_abs1.at[:, 4].set(jnp.abs(_HALF_PI - l1_abs1[:, 4]))
    loss_1 = smooth(l1_abs1)
    if logspace:
        loss_0 = jnp.log1p(loss_0)
        loss_1 = jnp.log1p(loss_1)
    if reduction == 'mean':
        loss_0, loss_1 = loss_0.mean(1), loss_1.mean(1)
    elif reduction == 'sum':
        loss_0, loss_1 = loss_0.sum(1), loss_1.sum(1)
    losses = jnp.minimum(loss_0, loss_1)
    if weight is not None:
        w = weight if losses.ndim == 1 else weight[:, None]
        losses = jnp.where(jnp.sum(weight) > 0, losses * w, losses)
    if reduction == 'mean':
        return losses.mean()
    if reduction == 'sum':
        return losses.sum()
    return losses


def _make_boxes(key, n):
    k1, k2 = jax.random.split(key)
    return jnp.concatenate(
        [jax.random.normal(k1, (n, 4), jnp.float32),
         jax.random.uniform(k2, (n, 1), jnp.float32, 0.0, 180.0)], axis=1)


if __name__ == "__main__":
    key = jax.random.PRNGKey(0)
    ka, kb, kw, kc, kd, kw2 = jax.random.split(key, 6)

    # Small single-tile case: sum / mean / none, with and without weight.
    N = 8
    inp = _make_boxes(ka, N)
    tgt = _make_boxes(kb, N)
    weight = jax.random.uniform(kw, (N,), jnp.float32, 0.0, 1.0)

    out_sum = jax.block_until_ready(
        modulated_smooth_l1_loss(inp, tgt, weight, reduction='sum'))
    np.testing.assert_allclose(
        np.asarray(out_sum),
        np.asarray(_reference(inp, tgt, weight, reduction='sum')),
        rtol=1e-5, atol=1e-5)

    out_mean = jax.block_until_ready(
        modulated_smooth_l1_loss(inp, tgt, weight, reduction='mean'))
    np.testing.assert_allclose(
        np.asarray(out_mean),
        np.asarray(_reference(inp, tgt, weight, reduction='mean')),
        rtol=1e-5, atol=1e-5)

    out_none = jax.block_until_ready(
        modulated_smooth_l1_loss(inp, tgt, weight, reduction='none'))
    np.testing.assert_allclose(
        np.asarray(out_none),
        np.asarray(_reference(inp, tgt, weight, reduction='none')),
        rtol=1e-5, atol=1e-5)

    out_sum_nw = jax.block_until_ready(
        modulated_smooth_l1_loss(inp, tgt, None, reduction='sum'))
    np.testing.assert_allclose(
        np.asarray(out_sum_nw),
        np.asarray(_reference(inp, tgt, None, reduction='sum')),
        rtol=1e-5, atol=1e-5)

    # Multi-tile case (grid > 1, "parallel" axis, per-tile dense (8,128) partials).
    N2 = 5000
    inp2 = _make_boxes(kc, N2)
    tgt2 = _make_boxes(kd, N2)
    weight2 = jax.random.uniform(kw2, (N2,), jnp.float32, 0.0, 1.0)

    out2 = jax.block_until_ready(
        modulated_smooth_l1_loss(inp2, tgt2, weight2, reduction='sum', max_tile_c=256))
    np.testing.assert_allclose(
        np.asarray(out2),
        np.asarray(_reference(inp2, tgt2, weight2, reduction='sum')),
        rtol=1e-4, atol=1e-3)

    out2_none = jax.block_until_ready(
        modulated_smooth_l1_loss(inp2, tgt2, weight2, reduction='none', max_tile_c=256))
    np.testing.assert_allclose(
        np.asarray(out2_none),
        np.asarray(_reference(inp2, tgt2, weight2, reduction='none')),
        rtol=1e-5, atol=1e-5)

    print("KERNEL_OK")
</pallas_src>

<mosaic_0001>
module attributes {stable_mosaic.version = 11 : i64} {
  func.func @_reduce_kernel(%arg0: i32, %arg1: memref<5x8x128xf32, #tpu.memory_space<vmem>>, %arg2: memref<5x8x128xf32, #tpu.memory_space<vmem>>, %arg3: memref<8x128xf32, #tpu.memory_space<vmem>>, %arg4: memref<8x128xf32, #tpu.memory_space<vmem>>) attributes {dimension_semantics = [#tpu.dimension_semantics<parallel>], iteration_bounds = array<i64: 1>, scalar_prefetch = 0 : i64, scratch_operands = 0 : i64, tpu.core_type = #tpu.core_type<tc>, window_params = [{transform_indices = @transform_0, window_bounds = array<i64: 5, 8, 128>}, {transform_indices = @transform_1, window_bounds = array<i64: 5, 8, 128>}, {transform_indices = @transform_2, window_bounds = array<i64: 8, 128>}, {transform_indices = @transform_3, window_bounds = array<i64: 8, 128>}]} {
    %c0 = arith.constant 0 : index
    %c0_0 = arith.constant 0 : index
    %c0_1 = arith.constant 0 : index
    %0 = vector.load %arg1[%c0, %c0_0, %c0_1] : memref<5x8x128xf32, #tpu.memory_space<vmem>>, vector<1x8x128xf32>
    %1 = vector.shape_cast %0 : vector<1x8x128xf32> to vector<8x128xf32>
    %c0_2 = arith.constant 0 : index
    %c0_3 = arith.constant 0 : index
    %c0_4 = arith.constant 0 : index
    %2 = vector.load %arg2[%c0_2, %c0_3, %c0_4] : memref<5x8x128xf32, #tpu.memory_space<vmem>>, vector<1x8x128xf32>
    %3 = vector.shape_cast %2 : vector<1x8x128xf32> to vector<8x128xf32>
    %4 = arith.subf %1, %3 : vector<8x128xf32>
    %5 = math.absf %4 : vector<8x128xf32>
    %6 = math.log1p %5 : vector<8x128xf32>
    %cst = arith.constant 0.111111112 : f32
    %7 = vector.broadcast %cst : f32 to vector<8x128xf32>
    %8 = arith.cmpf olt, %6, %7 : vector<8x128xf32>
    %cst_5 = arith.constant 4.500000e+00 : f32
    %9 = vector.broadcast %cst_5 : f32 to vector<8x128xf32>
    %10 = arith.mulf %9, %6 : vector<8x128xf32>
    %11 = arith.mulf %10, %6 : vector<8x128xf32>
    %cst_6 = arith.constant 0.055555556 : f32
    %12 = vector.broadcast %cst_6 : f32 to vector<8x128xf32>
    %13 = arith.subf %6, %12 : vector<8x128xf32>
    %14 = arith.select %8, %11, %13 : vector<8x128xi1>, vector<8x128xf32>
    %15 = math.log1p %14 : vector<8x128xf32>
    %c1 = arith.constant 1 : index
    %c0_7 = arith.constant 0 : index
    %c0_8 = arith.constant 0 : index
    %16 = vector.load %arg1[%c1, %c0_7, %c0_8] : memref<5x8x128xf32, #tpu.memory_space<vmem>>, vector<1x8x128xf32>
    %17 = vector.shape_cast %16 : vector<1x8x128xf32> to vector<8x128xf32>
    %c1_9 = arith.constant 1 : index
    %c0_10 = arith.constant 0 : index
    %c0_11 = arith.constant 0 : index
    %18 = vector.load %arg2[%c1_9, %c0_10, %c0_11] : memref<5x8x128xf32, #tpu.memory_space<vmem>>, vector<1x8x128xf32>
    %19 = vector.shape_cast %18 : vector<1x8x128xf32> to vector<8x128xf32>
    %20 = arith.subf %17, %19 : vector<8x128xf32>
    %21 = math.absf %20 : vector<8x128xf32>
    %22 = math.log1p %21 : vector<8x128xf32>
    %cst_12 = arith.constant 0.111111112 : f32
    %23 = vector.broadcast %cst_12 : f32 to vector<8x128xf32>
    %24 = arith.cmpf olt, %22, %23 : vector<8x128xf32>
    %cst_13 = arith.constant 4.500000e+00 : f32
    %25 = vector.broadcast %cst_13 : f32 to vector<8x128xf32>
    %26 = arith.mulf %25, %22 : vector<8x128xf32>
    %27 = arith.mulf %26, %22 : vector<8x128xf32>
    %cst_14 = arith.constant 0.055555556 : f32
    %28 = vector.broadcast %cst_14 : f32 to vector<8x128xf32>
    %29 = arith.subf %22, %28 : vector<8x128xf32>
    %30 = arith.select %24, %27, %29 : vector<8x128xi1>, vector<8x128xf32>
    %31 = math.log1p %30 : vector<8x128xf32>
    %32 = arith.addf %15, %31 : vector<8x128xf32>
    %c2 = arith.constant 2 : index
    %c0_15 = arith.constant 0 : index
    %c0_16 = arith.constant 0 : index
    %33 = vector.load %arg1[%c2, %c0_15, %c0_16] : memref<5x8x128xf32, #tpu.memory_space<vmem>>, vector<1x8x128xf32>
    %34 = vector.shape_cast %33 : vector<1x8x128xf32> to vector<8x128xf32>
    %c3 = arith.constant 3 : index
    %c0_17 = arith.constant 0 : index
    %c0_18 = arith.constant 0 : index
    %35 = vector.load %arg1[%c3, %c0_17, %c0_18] : memref<5x8x128xf32, #tpu.memory_space<vmem>>, vector<1x8x128xf32>
    %36 = vector.shape_cast %35 : vector<1x8x128xf32> to vector<8x128xf32>
    %c2_19 = arith.constant 2 : index
    %c0_20 = arith.constant 0 : index
    %c0_21 = arith.constant 0 : index
    %37 = vector.load %arg2[%c2_19, %c0_20, %c0_21] : memref<5x8x128xf32, #tpu.memory_space<vmem>>, vector<1x8x128xf32>
    %38 = vector.shape_cast %37 : vector<1x8x128xf32> to vector<8x128xf32>
    %c3_22 = arith.constant 3 : index
    %c0_23 = arith.constant 0 : index
    %c0_24 = arith.constant 0 : index
    %39 = vector.load %arg2[%c3_22, %c0_23, %c0_24] : memref<5x8x128xf32, #tpu.memory_space<vmem>>, vector<1x8x128xf32>
    %40 = vector.shape_cast %39 : vector<1x8x128xf32> to vector<8x128xf32>
    %c4 = arith.constant 4 : index
    %c0_25 = arith.constant 0 : index
    %c0_26 = arith.constant 0 : index
    %41 = vector.load %arg1[%c4, %c0_25, %c0_26] : memref<5x8x128xf32, #tpu.memory_space<vmem>>, vector<1x8x128xf32>
    %42 = vector.shape_cast %41 : vector<1x8x128xf32> to vector<8x128xf32>
    %cst_27 = arith.constant 0.0174532924 : f32
    %43 = vector.broadcast %cst_27 : f32 to vector<8x128xf32>
    %44 = arith.mulf %42, %43 : vector<8x128xf32>
    %c4_28 = arith.constant 4 : index
    %c0_29 = arith.constant 0 : index
    %c0_30 = arith.constant 0 : index
    %45 = vector.load %arg2[%c4_28, %c0_29, %c0_30] : memref<5x8x128xf32, #tpu.memory_space<vmem>>, vector<1x8x128xf32>
    %46 = vector.shape_cast %45 : vector<1x8x128xf32> to vector<8x128xf32>
    %cst_31 = arith.constant 0.0174532924 : f32
    %47 = vector.broadcast %cst_31 : f32 to vector<8x128xf32>
    %48 = arith.mulf %46, %47 : vector<8x128xf32>
    %49 = arith.subf %44, %48 : vector<8x128xf32>
    %50 = math.absf %49 : vector<8x128xf32>
    %51 = arith.subf %34, %38 : vector<8x128xf32>
    %52 = math.absf %51 : vector<8x128xf32>
    %53 = math.log1p %52 : vector<8x128xf32>
    %cst_32 = arith.constant 0.111111112 : f32
    %54 = vector.broadcast %cst_32 : f32 to vector<8x128xf32>
    %55 = arith.cmpf olt, %53, %54 : vector<8x128xf32>
    %cst_33 = arith.constant 4.500000e+00 : f32
    %56 = vector.broadcast %cst_33 : f32 to vector<8x128xf32>
    %57 = arith.mulf %56, %53 : vector<8x128xf32>
    %58 = arith.mulf %57, %53 : vector<8x128xf32>
    %cst_34 = arith.constant 0.055555556 : f32
    %59 = vector.broadcast %cst_34 : f32 to vector<8x128xf32>
    %60 = arith.subf %53, %59 : vector<8x128xf32>
    %61 = arith.select %55, %58, %60 : vector<8x128xi1>, vector<8x128xf32>
    %62 = math.log1p %61 : vector<8x128xf32>
    %63 = arith.addf %32, %62 : vector<8x128xf32>
    %64 = arith.subf %36, %40 : vector<8x128xf32>
    %65 = math.absf %64 : vector<8x128xf32>
    %66 = math.log1p %65 : vector<8x128xf32>
    %cst_35 = arith.constant 0.111111112 : f32
    %67 = vector.broadcast %cst_35 : f32 to vector<8x128xf32>
    %68 = arith.cmpf olt, %66, %67 : vector<8x128xf32>
    %cst_36 = arith.constant 4.500000e+00 : f32
    %69 = vector.broadcast %cst_36 : f32 to vector<8x128xf32>
    %70 = arith.mulf %69, %66 : vector<8x128xf32>
    %71 = arith.mulf %70, %66 : vector<8x128xf32>
    %cst_37 = arith.constant 0.055555556 : f32
    %72 = vector.broadcast %cst_37 : f32 to vector<8x128xf32>
    %73 = arith.subf %66, %72 : vector<8x128xf32>
    %74 = arith.select %68, %71, %73 : vector<8x128xi1>, vector<8x128xf32>
    %75 = math.log1p %74 : vector<8x128xf32>
    %76 = arith.addf %63, %75 : vector<8x128xf32>
    %77 = math.log1p %50 : vector<8x128xf32>
    %cst_38 = arith.constant 0.111111112 : f32
    %78 = vector.broadcast %cst_38 : f32 to vector<8x128xf32>
    %79 = arith.cmpf olt, %77, %78 : vector<8x128xf32>
    %cst_39 = arith.constant 4.500000e+00 : f32
    %80 = vector.broadcast %cst_39 : f32 to vector<8x128xf32>
    %81 = arith.mulf %80, %77 : vector<8x128xf32>
    %82 = arith.mulf %81, %77 : vector<8x128xf32>
    %cst_40 = arith.constant 0.055555556 : f32
    %83 = vector.broadcast %cst_40 : f32 to vector<8x128xf32>
    %84 = arith.subf %77, %83 : vector<8x128xf32>
    %85 = arith.select %79, %82, %84 : vector<8x128xi1>, vector<8x128xf32>
    %86 = math.log1p %85 : vector<8x128xf32>
    %87 = arith.addf %76, %86 : vector<8x128xf32>
    %88 = arith.subf %36, %38 : vector<8x128xf32>
    %89 = math.absf %88 : vector<8x128xf32>
    %90 = math.log1p %89 : vector<8x128xf32>
    %cst_41 = arith.constant 0.111111112 : f32
    %91 = vector.broadcast %cst_41 : f32 to vector<8x128xf32>
    %92 = arith.cmpf olt, %90, %91 : vector<8x128xf32>
    %cst_42 = arith.constant 4.500000e+00 : f32
    %93 = vector.broadcast %cst_42 : f32 to vector<8x128xf32>
    %94 = arith.mulf %93, %90 : vector<8x128xf32>
    %95 = arith.mulf %94, %90 : vector<8x128xf32>
    %cst_43 = arith.constant 0.055555556 : f32
    %96 = vector.broadcast %cst_43 : f32 to vector<8x128xf32>
    %97 = arith.subf %90, %96 : vector<8x128xf32>
    %98 = arith.select %92, %95, %97 : vector<8x128xi1>, vector<8x128xf32>
    %99 = math.log1p %98 : vector<8x128xf32>
    %100 = arith.addf %32, %99 : vector<8x128xf32>
    %101 = arith.subf %34, %40 : vector<8x128xf32>
    %102 = math.absf %101 : vector<8x128xf32>
    %103 = math.log1p %102 : vector<8x128xf32>
    %cst_44 = arith.constant 0.111111112 : f32
    %104 = vector.broadcast %cst_44 : f32 to vector<8x128xf32>
    %105 = arith.cmpf olt, %103, %104 : vector<8x128xf32>
    %cst_45 = arith.constant 4.500000e+00 : f32
    %106 = vector.broadcast %cst_45 : f32 to vector<8x128xf32>
    %107 = arith.mulf %106, %103 : vector<8x128xf32>
    %108 = arith.mulf %107, %103 : vector<8x128xf32>
    %cst_46 = arith.constant 0.055555556 : f32
    %109 = vector.broadcast %cst_46 : f32 to vector<8x128xf32>
    %110 = arith.subf %103, %109 : vector<8x128xf32>
    %111 = arith.select %105, %108, %110 : vector<8x128xi1>, vector<8x128xf32>
    %112 = math.log1p %111 : vector<8x128xf32>
    %113 = arith.addf %100, %112 : vector<8x128xf32>
    %cst_47 = arith.constant 1.57079637 : f32
    %114 = vector.broadcast %cst_47 : f32 to vector<8x128xf32>
    %115 = arith.subf %114, %50 : vector<8x128xf32>
    %116 = math.absf %115 : vector<8x128xf32>
    %117 = math.log1p %116 : vector<8x128xf32>
    %cst_48 = arith.constant 0.111111112 : f32
    %118 = vector.broadcast %cst_48 : f32 to vector<8x128xf32>
    %119 = arith.cmpf olt, %117, %118 : vector<8x128xf32>
    %cst_49 = arith.constant 4.500000e+00 : f32
    %120 = vector.broadcast %cst_49 : f32 to vector<8x128xf32>
    %121 = arith.mulf %120, %117 : vector<8x128xf32>
    %122 = arith.mulf %121, %117 : vector<8x128xf32>
    %cst_50 = arith.constant 0.055555556 : f32
    %123 = vector.broadcast %cst_50 : f32 to vector<8x128xf32>
    %124 = arith.subf %117, %123 : vector<8x128xf32>
    %125 = arith.select %119, %122, %124 : vector<8x128xi1>, vector<8x128xf32>
    %126 = math.log1p %125 : vector<8x128xf32>
    %127 = arith.addf %113, %126 : vector<8x128xf32>
    %128 = arith.minimumf %87, %127 : vector<8x128xf32>
    %c0_51 = arith.constant 0 : index
    %c0_52 = arith.constant 0 : index
    %129 = vector.load %arg3[%c0_51, %c0_52] : memref<8x128xf32, #tpu.memory_space<vmem>>, vector<8x128xf32>
    %130 = arith.mulf %128, %129 : vector<8x128xf32>
    %c0_53 = arith.constant 0 : index
    %c0_54 = arith.constant 0 : index
    %131 = vector.load %arg4[%c0_53, %c0_54] : memref<8x128xf32, #tpu.memory_space<vmem>>, vector<8x128xf32>
    tpu.vector_store %arg4[%c0_53, %c0_54], %130 {strides = array<i32>} : memref<8x128xf32, #tpu.memory_space<vmem>>, vector<8x128xf32>,
    return
  }
  func.func @transform_0(%arg0: i32) -> (i32, i32, i32) {
    %c0_i32 = arith.constant 0 : i32
    %c0_i32_0 = arith.constant 0 : i32
    %c0_i32_1 = arith.constant 0 : i32
    return %c0_i32, %c0_i32_0, %arg0 : i32, i32, i32
  }
  func.func @transform_1(%arg0: i32) -> (i32, i32, i32) {
    %c0_i32 = arith.constant 0 : i32
    %c0_i32_0 = arith.constant 0 : i32
    %c0_i32_1 = arith.constant 0 : i32
    return %c0_i32, %c0_i32_0, %arg0 : i32, i32, i32
  }
  func.func @transform_2(%arg0: i32) -> (i32, i32) {
    %c0_i32 = arith.constant 0 : i32
    %c0_i32_0 = arith.constant 0 : i32
    return %c0_i32, %arg0 : i32, i32
  }
  func.func @transform_3(%arg0: i32) -> (i32, i32) {
    %c0_i32 = arith.constant 0 : i32
    %c0_i32_0 = arith.constant 0 : i32
    return %c0_i32, %arg0 : i32, i32
  }
}

</mosaic_0001>

<llo_original>
// kernel: tpu_custom_call.1
$region0: #{tpu_custom_call.1}
  #allocation0 [shape = 'u32[]', space=smem, size = 0x4, offset = 0x4, fixed_abs, tag = 'smem constant byte address 0x4 - core index']
  #allocation1 [shape = 'u32[144,128]{1,0:T(1,128)}', space=vmem, size = 0x12000, scoped, tag = 'internal scratch']
  %s0 = inlined_call_operand.hbm [shape: f32[5,8,128], index: 0, kind: input, shape index: {}]
  %s1 = inlined_call_operand.hbm [shape: f32[5,8,128], index: 1, kind: input, shape index: {}]
  %s2 = inlined_call_operand.hbm [shape: f32[8,128], index: 2, kind: input, shape index: {}]
  %s3 = inlined_call_operand.hbm [shape: f32[8,128], index: 3, kind: output, shape index: {}]
  %s4 = sld [smem:[#allocation0]]
  $region34: #{tpu_custom_call.1} parent=0
    _
  %s6 = ssub.s32 1, %s4
  %s7 = scalar_select 0, %s6, %s4
  $region1: #{tpu_custom_call.1} parent=0
    #allocation2 [shape = 'u8[20480]{0}', space=vmem, size = 0x5000, scoped, tag = 'input window, operand 0, single buffered']
    #allocation3 [shape = 's32[1]{0}', space=sflag, size = 0x4, scoped, tag = 'scoped memory for tpu_custom_call.1']
    #allocation4 [shape = 's32[1]{0}', space=sflag, size = 0x4, scoped, tag = 'scoped memory for tpu_custom_call.1']
    #allocation5 [shape = 'u8[20480]{0}', space=vmem, size = 0x5000, scoped, tag = 'input window, operand 1, single buffered']
    #allocation6 [shape = 's32[1]{0}', space=sflag, size = 0x4, scoped, tag = 'scoped memory for tpu_custom_call.1']
    #allocation7 [shape = 'u8[4096]{0}', space=vmem, size = 0x1000, scoped, tag = 'input window, operand 2, single buffered']
    #allocation8 [shape = 'u8[4096]{0}', space=vmem, size = 0x1000, scoped, tag = 'output window, operand 0, single buffered']
    %8 = vsyncpa [#allocation3], 0
    %9 = vsyncpa [#allocation6], 0
    %10 = vsyncpa [#allocation4], 0
    // Predicated region
    $region2: #{tpu_custom_call.1} parent=1 // pred_check
      _
    $region3: #{tpu_custom_call.1} parent=1 // pred_check_branch
      %12 = sbr.rel (0) target = $region5
    $region4: #{tpu_custom_call.1} parent=1 // pred_region
      %s14 = ssub.s32 640, 640
      %15 = vsyncadd [#allocation3], %s14
      %s16 = sshll.u32 [#allocation2], 4
      %s17 = int_to_ptr.vmem [resolvable:$true] %s16
      %22 = dma.hbm_to_vmem [thread:$0]  %s0, 640, %s17, [#allocation3], 128, 128, 8
    $region5: #{tpu_custom_call.1} parent=1 // pred_fallthru
      _
    // Predicated region
    $region6: #{tpu_custom_call.1} parent=1 // pred_check
      _
    $region7: #{tpu_custom_call.1} parent=1 // pred_check_branch
      %24 = sbr.rel (0) target = $region9
    $region8: #{tpu_custom_call.1} parent=1 // pred_region
      %s26 = ssub.s32 640, 640
      %27 = vsyncadd [#allocation6], %s26
      %s28 = sshll.u32 [#allocation5], 4
      %s29 = int_to_ptr.vmem [resolvable:$true] %s28
      %34 = dma.hbm_to_vmem [thread:$0]  %s1, 640, %s29, [#allocation6], 128, 128, 8
    $region9: #{tpu_custom_call.1} parent=1 // pred_fallthru
      _
    // Predicated region
    $region10: #{tpu_custom_call.1} parent=1 // pred_check
      _
    $region11: #{tpu_custom_call.1} parent=1 // pred_check_branch
      %36 = sbr.rel (0) target = $region13
    $region12: #{tpu_custom_call.1} parent=1 // pred_region
      %s38 = ssub.s32 128, 128
      %39 = vsyncadd [#allocation6], %s38
      %s41 = sshll.u32 [#allocation7], 4
      %s42 = int_to_ptr.vmem [resolvable:$true] %s41
      %44 = dma.hbm_to_vmem [thread:$0]  %s2, 128, %s42, [#allocation6]
    $region13: #{tpu_custom_call.1} parent=1 // pred_fallthru
      _
    // Predicated region
    $region14: #{tpu_custom_call.1} parent=1 // pred_check
      _
    $region15: #{tpu_custom_call.1} parent=1 // pred_check_branch
      %46 = sbr.rel (0) target = $region17
    $region16: #{tpu_custom_call.1} parent=1 // pred_region
      %47 = dma.done [#allocation3], 640
    $region17: #{tpu_custom_call.1} parent=1 // pred_fallthru
      _
    // Predicated region
    $region18: #{tpu_custom_call.1} parent=1 // pred_check
      _
    $region19: #{tpu_custom_call.1} parent=1 // pred_check_branch
      %49 = sbr.rel (0) target = $region21
    $region20: #{tpu_custom_call.1} parent=1 // pred_region
      %50 = dma.done [#allocation6], 640
    $region21: #{tpu_custom_call.1} parent=1 // pred_fallthru
      _
    // Predicated region
    $region22: #{tpu_custom_call.1} parent=1 // pred_check
      _
    $region23: #{tpu_custom_call.1} parent=1 // pred_check_branch
      %52 = sbr.rel (0) target = $region25
    $region24: #{tpu_custom_call.1} parent=1 // pred_region
      %53 = dma.done [#allocation6], 128
    $region25: #{tpu_custom_call.1} parent=1 // pred_fallthru
      _
    %v54 = vld [vmem:[#allocation2] sm:$0xff]
    %v55 = vld [vmem:[#allocation5] sm:$0xff]
    %v56 = vsub.f32 %v54, %v55
    %v57 = vand.u32 2147483647, %v56
    %v58 = vadd.f32 %v57, 1.0
    %v59 = vlog2.pop %v58
    %v60 = vmul.f32 %v59, 0.6931472
    %v61 = vmul.f32 -0.5, %v57
    %v62 = vadd.f32 %v61, 1.0
    %v63 = vmul.f32 %v62, %v57
    %v64 = vand.u32 2147483647, %v57
    %vm65 = vcmp.lt.f32.partialorder %v64, 0.0004427343
    %v66 = vsel %vm65, %v63, %v60
    %vm67 = vcmp.lt.f32.partialorder %v66, 0.11111111
    %v68 = vmul.f32 %v66, 4.5
    %v69 = vmul.f32 %v68, %v66
    %v70 = vsub.f32 %v66, 0.055555556
    %v71 = vsel %vm67, %v69, %v70
    %v72 = vadd.f32 %v71, 1.0
    %v73 = vlog2.pop %v72
    %v74 = vmul.f32 %v73, 0.6931472
    %v75 = vmul.f32 -0.5, %v71
    %v76 = vadd.f32 %v75, 1.0
    %v77 = vmul.f32 %v76, %v71
    %v78 = vand.u32 2147483647, %v71
    %vm79 = vcmp.lt.f32.partialorder %v78, 0.0004427343
    %v80 = vsel %vm79, %v77, %v74
    %s81 = scalar_lea.vmem [#allocation2], 8
    %v82 = vld [vmem:[%s81] sm:$0xff]
    %s83 = scalar_lea.vmem [#allocation5], 8
    %v84 = vld [vmem:[%s83] sm:$0xff]
    %v85 = vsub.f32 %v82, %v84
    %v86 = vand.u32 2147483647, %v85
    %v87 = vadd.f32 %v86, 1.0
    %v88 = vlog2.pop %v87
    %v89 = vmul.f32 %v88, 0.6931472
    %v90 = vmul.f32 -0.5, %v86
    %v91 = vadd.f32 %v90, 1.0
    %v92 = vmul.f32 %v91, %v86
    %v93 = vand.u32 2147483647, %v86
    %vm94 = vcmp.lt.f32.partialorder %v93, 0.0004427343
    %v95 = vsel %vm94, %v92, %v89
    %vm96 = vcmp.lt.f32.partialorder %v95, 0.11111111
    %v97 = vmul.f32 %v95, 4.5
    %v98 = vmul.f32 %v97, %v95
    %v99 = vsub.f32 %v95, 0.055555556
    %v100 = vsel %vm96, %v98, %v99
    %v101 = vadd.f32 %v100, 1.0
    %v102 = vlog2.pop %v101
    %v103 = vmul.f32 %v102, 0.6931472
    %v104 = vmul.f32 -0.5, %v100
    %v105 = vadd.f32 %v104, 1.0
    %v106 = vmul.f32 %v105, %v100
    %v107 = vand.u32 2147483647, %v100
    %vm108 = vcmp.lt.f32.partialorder %v107, 0.0004427343
    %v109 = vsel %vm108, %v106, %v103
    %v110 = vadd.f32 %v80, %v109
    %s111 = scalar_lea.vmem [#allocation2], 16
    %v112 = vld [vmem:[%s111] sm:$0xff]
    %s113 = scalar_lea.vmem [#allocation2], 24
    %v114 = vld [vmem:[%s113] sm:$0xff]
    %s115 = scalar_lea.vmem [#allocation5], 16
    %v116 = vld [vmem:[%s115] sm:$0xff]
    %s117 = scalar_lea.vmem [#allocation5], 24
    %v118 = vld [vmem:[%s117] sm:$0xff]
    %s119 = scalar_lea.vmem [#allocation2], 32
    %v120 = vld [vmem:[%s119] sm:$0xff]
    %v121 = vmul.f32 %v120, 0.017453292
    %s122 = scalar_lea.vmem [#allocation5], 32
    %v123 = vld [vmem:[%s122] sm:$0xff]
    %v124 = vmul.f32 %v123, 0.017453292
    %v125 = vsub.f32 %v121, %v124
    %v126 = vand.u32 2147483647, %v125
    %v127 = vsub.f32 %v112, %v116
    %v128 = vand.u32 2147483647, %v127
    %v129 = vadd.f32 %v128, 1.0
    %v130 = vlog2.pop %v129
    %v131 = vmul.f32 %v130, 0.6931472
    %v132 = vmul.f32 -0.5, %v128
    %v133 = vadd.f32 %v132, 1.0
    %v134 = vmul.f32 %v133, %v128
    %v135 = vand.u32 2147483647, %v128
    %vm136 = vcmp.lt.f32.partialorder %v135, 0.0004427343
    %v137 = vsel %vm136, %v134, %v131
    %vm138 = vcmp.lt.f32.partialorder %v137, 0.11111111
    %v139 = vmul.f32 %v137, 4.5
    %v140 = vmul.f32 %v139, %v137
    %v141 = vsub.f32 %v137, 0.055555556
    %v142 = vsel %vm138, %v140, %v141
    %v143 = vadd.f32 %v142, 1.0
    %v144 = vlog2.pop %v143
    %v145 = vmul.f32 %v144, 0.6931472
    %v146 = vmul.f32 -0.5, %v142
    %v147 = vadd.f32 %v146, 1.0
    %v148 = vmul.f32 %v147, %v142
    %v149 = vand.u32 2147483647, %v142
    %vm150 = vcmp.lt.f32.partialorder %v149, 0.0004427343
    %v151 = vsel %vm150, %v148, %v145
    %v152 = vadd.f32 %v110, %v151
    %v153 = vsub.f32 %v114, %v118
    %v154 = vand.u32 2147483647, %v153
    %v155 = vadd.f32 %v154, 1.0
    %v156 = vlog2.pop %v155
    %v157 = vmul.f32 %v156, 0.6931472
    %v158 = vmul.f32 -0.5, %v154
    %v159 = vadd.f32 %v158, 1.0
    %v160 = vmul.f32 %v159, %v154
    %v161 = vand.u32 2147483647, %v154
    %vm162 = vcmp.lt.f32.partialorder %v161, 0.0004427343
    %v163 = vsel %vm162, %v160, %v157
    %vm164 = vcmp.lt.f32.partialorder %v163, 0.11111111
    %v165 = vmul.f32 %v163, 4.5
    %v166 = vmul.f32 %v165, %v163
    %v167 = vsub.f32 %v163, 0.055555556
    %v168 = vsel %vm164, %v166, %v167
    %v169 = vadd.f32 %v168, 1.0
    %v170 = vlog2.pop %v169
    %v171 = vmul.f32 %v170, 0.6931472
    %v172 = vmul.f32 -0.5, %v168
    %v173 = vadd.f32 %v172, 1.0
    %v174 = vmul.f32 %v173, %v168
    %v175 = vand.u32 2147483647, %v168
    %vm176 = vcmp.lt.f32.partialorder %v175, 0.0004427343
    %v177 = vsel %vm176, %v174, %v171
    %v178 = vadd.f32 %v152, %v177
    %v179 = vadd.f32 %v126, 1.0
    %v180 = vlog2.pop %v179
    %v181 = vmul.f32 %v180, 0.6931472
    %v182 = vmul.f32 -0.5, %v126
    %v183 = vadd.f32 %v182, 1.0
    %v184 = vmul.f32 %v183, %v126
    %v185 = vand.u32 2147483647, %v126
    %vm186 = vcmp.lt.f32.partialorder %v185, 0.0004427343
    %v187 = vsel %vm186, %v184, %v181
    %vm188 = vcmp.lt.f32.partialorder %v187, 0.11111111
    %v189 = vmul.f32 %v187, 4.5
    %v190 = vmul.f32 %v189, %v187
    %v191 = vsub.f32 %v187, 0.055555556
    %v192 = vsel %vm188, %v190, %v191
    %v193 = vadd.f32 %v192, 1.0
    %v194 = vlog2.pop %v193
    %v195 = vmul.f32 %v194, 0.6931472
    %v196 = vmul.f32 -0.5, %v192
    %v197 = vadd.f32 %v196, 1.0
    %v198 = vmul.f32 %v197, %v192
    %v199 = vand.u32 2147483647, %v192
    %vm200 = vcmp.lt.f32.partialorder %v199, 0.0004427343
    %v201 = vsel %vm200, %v198, %v195
    %v202 = vadd.f32 %v178, %v201
    %v203 = vsub.f32 %v114, %v116
    %v204 = vand.u32 2147483647, %v203
    %v205 = vadd.f32 %v204, 1.0
    %v206 = vlog2.pop %v205
    %v207 = vmul.f32 %v206, 0.6931472
    %v208 = vmul.f32 -0.5, %v204
    %v209 = vadd.f32 %v208, 1.0
    %v210 = vmul.f32 %v209, %v204
    %v211 = vand.u32 2147483647, %v204
    %vm212 = vcmp.lt.f32.partialorder %v211, 0.0004427343
    %v213 = vsel %vm212, %v210, %v207
    %vm214 = vcmp.lt.f32.partialorder %v213, 0.11111111
    %v215 = vmul.f32 %v213, 4.5
    %v216 = vmul.f32 %v215, %v213
    %v217 = vsub.f32 %v213, 0.055555556
    %v218 = vsel %vm214, %v216, %v217
    %v219 = vadd.f32 %v218, 1.0
    %v220 = vlog2.pop %v219
    %v221 = vmul.f32 %v220, 0.6931472
    %v222 = vmul.f32 -0.5, %v218
    %v223 = vadd.f32 %v222, 1.0
    %v224 = vmul.f32 %v223, %v218
    %v225 = vand.u32 2147483647, %v218
    %vm226 = vcmp.lt.f32.partialorder %v225, 0.0004427343
    %v227 = vsel %vm226, %v224, %v221
    %v228 = vadd.f32 %v110, %v227
    %v229 = vsub.f32 %v112, %v118
    %v230 = vand.u32 2147483647, %v229
    %v231 = vadd.f32 %v230, 1.0
    %v232 = vlog2.pop %v231
    %v233 = vmul.f32 %v232, 0.6931472
    %v234 = vmul.f32 -0.5, %v230
    %v235 = vadd.f32 %v234, 1.0
    %v236 = vmul.f32 %v235, %v230
    %v237 = vand.u32 2147483647, %v230
    %vm238 = vcmp.lt.f32.partialorder %v237, 0.0004427343
    %v239 = vsel %vm238, %v236, %v233
    %vm240 = vcmp.lt.f32.partialorder %v239, 0.11111111
    %v241 = vmul.f32 %v239, 4.5
    %v242 = vmul.f32 %v241, %v239
    %v243 = vsub.f32 %v239, 0.055555556
    %v244 = vsel %vm240, %v242, %v243
    %v245 = vadd.f32 %v244, 1.0
    %v246 = vlog2.pop %v245
    %v247 = vmul.f32 %v246, 0.6931472
    %v248 = vmul.f32 -0.5, %v244
    %v249 = vadd.f32 %v248, 1.0
    %v250 = vmul.f32 %v249, %v244
    %v251 = vand.u32 2147483647, %v244
    %vm252 = vcmp.lt.f32.partialorder %v251, 0.0004427343
    %v253 = vsel %vm252, %v250, %v247
    %v254 = vadd.f32 %v228, %v253
    %v255 = vsub.f32 1.5707964, %v126
    %v256 = vand.u32 2147483647, %v255
    %v257 = vadd.f32 %v256, 1.0
    %v258 = vlog2.pop %v257
    %v259 = vmul.f32 %v258, 0.6931472
    %v260 = vmul.f32 -0.5, %v256
    %v261 = vadd.f32 %v260, 1.0
    %v262 = vmul.f32 %v261, %v256
    %v263 = vand.u32 2147483647, %v256
    %vm264 = vcmp.lt.f32.partialorder %v263, 0.0004427343
    %v265 = vsel %vm264, %v262, %v259
    %vm266 = vcmp.lt.f32.partialorder %v265, 0.11111111
    %v267 = vmul.f32 %v265, 4.5
    %v268 = vmul.f32 %v267, %v265
    %v269 = vsub.f32 %v265, 0.055555556
    %v270 = vsel %vm266, %v268, %v269
    %v271 = vadd.f32 %v270, 1.0
    %v272 = vlog2.pop %v271
    %v273 = vmul.f32 %v272, 0.6931472
    %v274 = vmul.f32 -0.5, %v270
    %v275 = vadd.f32 %v274, 1.0
    %v276 = vmul.f32 %v275, %v270
    %v277 = vand.u32 2147483647, %v270
    %vm278 = vcmp.lt.f32.partialorder %v277, 0.0004427343
    %v279 = vsel %vm278, %v276, %v273
    %v280 = vadd.f32 %v254, %v279
    %v281 = vmin.f32 %v202, %v280
    %v282 = vld [vmem:[#allocation7] sm:$0xff]
    %v283 = vmul.f32 %v281, %v282
    %284 = vst [vmem:[#allocation8] sm:$0xff] %v283
    // Predicated region
    $region26: #{tpu_custom_call.1} parent=1 // pred_check
      _
    $region27: #{tpu_custom_call.1} parent=1 // pred_check_branch
      %286 = sbr.rel (0) target = $region29
    $region28: #{tpu_custom_call.1} parent=1 // pred_region
      %s288 = ssub.s32 128, 128
      %289 = vsyncadd [#allocation4], %s288
      %s291 = sshll.u32 [#allocation8], 4
      %s292 = int_to_ptr.vmem [resolvable:$true] %s291
      %294 = dma.vmem_to_hbm [thread:$0]  %s292, 128, %s3, [#allocation4]
    $region29: #{tpu_custom_call.1} parent=1 // pred_fallthru
      _
    // Predicated region
    $region30: #{tpu_custom_call.1} parent=1 // pred_check
      _
    $region31: #{tpu_custom_call.1} parent=1 // pred_check_branch
      %296 = sbr.rel (0) target = $region33
    $region32: #{tpu_custom_call.1} parent=1 // pred_region
      %297 = dma.done [#allocation4], 128
    $region33: #{tpu_custom_call.1} parent=1 // pred_fallthru
      _
    %298 = vsyncpa [#allocation3], 1
    %299 = vsyncpa [#allocation6], 1
    %300 = vsyncpa [#allocation4], 1

</llo_original>
